<compile_context>
chip_gen: v6e
topology: v6e:2x2x1
jax: 0.10.0
libtpu: 0.0.40
codegen_flags: <defaults>
</compile_context>

<pallas_src>
import math

import jax
import jax.numpy as jnp
from jax.experimental import pallas as pl
from jax.experimental.pallas import tpu as pltpu

# --------------------------------------------------------------- SH tables --
SH_C0 = 0.28209479177387814
SH_C1 = 0.4886025119029199
SH_C2 = (1.0925484305920792, -1.0925484305920792, 0.31539156525252005,
         -1.0925484305920792, 0.5462742152960396)
SH_C3 = (-0.5900435899266435, 2.890611442640554, -0.4570457994644658,
         0.3731763325901154, -0.4570457994644658, 1.445305721320277,
         -0.5900435899266435)
SH_C4 = (2.5033429417967046, -1.7701307697799304, 0.9461746957575601,
         -0.6690465435572892, 0.10578554691520431, -0.6690465435572892,
         0.47308734787878004, -1.7701307697799304, 0.6258357354491761)


def _sh_values(max_degree, x, y, z):
    """Closed-form real SH basis values (eval_sh_bases convention).

    x, y, z are broadcast-compatible arrays.  Returns a list of
    (max_degree + 1)**2 entries; the l=0 entry is a Python float.
    """
    assert 0 <= max_degree <= 4, "eval_sh_bases supports degrees 0..4"
    vals = [SH_C0]
    if max_degree > 0:
        vals += [-SH_C1 * y, SH_C1 * z, -SH_C1 * x]
        if max_degree > 1:
            xx, yy, zz = x * x, y * y, z * z
            xy, yz, xz = x * y, y * z, x * z
            vals += [SH_C2[0] * xy,
                     SH_C2[1] * yz,
                     SH_C2[2] * (2.0 * zz - xx - yy),
                     SH_C2[3] * xz,
                     SH_C2[4] * (xx - yy)]
            if max_degree > 2:
                vals += [SH_C3[0] * y * (3.0 * xx - yy),
                         SH_C3[1] * xy * z,
                         SH_C3[2] * y * (4.0 * zz - xx - yy),
                         SH_C3[3] * z * (2.0 * zz - 3.0 * xx - 3.0 * yy),
                         SH_C3[4] * x * (4.0 * zz - xx - yy),
                         SH_C3[5] * z * (xx - yy),
                         SH_C3[6] * x * (xx - 3.0 * yy)]
                if max_degree > 3:
                    vals += [SH_C4[0] * xy * (xx - yy),
                             SH_C4[1] * yz * (3.0 * xx - yy),
                             SH_C4[2] * xy * (7.0 * zz - 1.0),
                             SH_C4[3] * yz * (7.0 * zz - 3.0),
                             SH_C4[4] * (zz * (35.0 * zz - 30.0) + 3.0),
                             SH_C4[5] * xz * (7.0 * zz - 3.0),
                             SH_C4[6] * (xx - yy) * (7.0 * zz - 1.0),
                             SH_C4[7] * xz * (xx - yy),
                             SH_C4[8] * (xx * xx - 6.0 * xx * yy + yy * yy)]
    return vals


# ------------------------------------------------------------------ kernel --

def _make_kernel(max_degree, block_rows):
    out_dim = (max_degree + 1) ** 2

    def kernel(vecs_ref, out_ref):
        # vecs_ref: (3, block_rows, 128)   out_ref: (out_dim, block_rows, 128)
        # Process one (8, 128) vreg worth of points at a time so the live
        # intermediate set stays within registers; store each channel as soon
        # as it is computed (full-vreg, unmasked, aligned stores).
        for s in range(block_rows // 8):
            r0 = s * 8
            x = vecs_ref[0, r0:r0 + 8, :]
            y = vecs_ref[1, r0:r0 + 8, :]
            z = vecs_ref[2, r0:r0 + 8, :]
            vals = _sh_values(max_degree, x, y, z)
            for c in range(out_dim):
                v = vals[c]
                if isinstance(v, float):
                    out_ref[c, r0:r0 + 8, :] = jnp.full((8, 128), v, jnp.float32)
                else:
                    out_ref[c, r0:r0 + 8, :] = v.astype(jnp.float32)

    return kernel


# ----------------------------------------------------------------- wrapper --

def full_ish(vecs, roughness=None, *, max_degree=1, tile_rows=256):
    """FullISH.forward: vecs (..., 3) -> (..., (max_degree+1)**2).

    `roughness` is accepted for API parity with the PyTorch module but is
    unused (the original forward ignores it).
    """
    del roughness  # ignored by FullISH.forward
    assert tile_rows % 8 == 0
    out_dim = (max_degree + 1) ** 2

    vecs = jnp.asarray(vecs, jnp.float32)
    batch_shape = vecs.shape[:-1]
    n = int(math.prod(batch_shape)) if batch_shape else 1

    # N is split across (sublane-rows, 128 lanes); pad to a whole grid block.
    rows_needed = max(1, pl.cdiv(n, 128))
    rows_needed = pl.cdiv(rows_needed, 8) * 8          # multiple of 8 sublanes
    block_rows = min(tile_rows, rows_needed)
    n_rows = pl.cdiv(rows_needed, block_rows) * block_rows
    n_pad = n_rows * 128

    v = vecs.reshape(n, 3)
    v = jnp.pad(v, ((0, n_pad - n), (0, 0)))
    v_cf = v.T.reshape(3, n_rows, 128)                 # channels-first layout

    grid = (n_rows // block_rows,)
    out = pl.pallas_call(
        _make_kernel(max_degree, block_rows),
        out_shape=jax.ShapeDtypeStruct((out_dim, n_rows, 128), jnp.float32),
        grid=grid,
        in_specs=[pl.BlockSpec((3, block_rows, 128), lambda i: (0, i, 0))],
        out_specs=pl.BlockSpec((out_dim, block_rows, 128), lambda i: (0, i, 0)),
        compiler_params=pltpu.CompilerParams(
            dimension_semantics=("parallel",)),
    )(v_cf)

    # Back to the PyTorch (..., out_dim) layout; consumers that accept the
    # channels-first (out_dim, N) layout could skip this transpose.
    out = out.reshape(out_dim, n_pad)[:, :n].T
    return out.reshape(*batch_shape, out_dim)


# ---------------------------------------------------------- pure-JAX check --

def full_ish_ref(vecs, roughness=None, *, max_degree=1):
    del roughness
    v = jnp.asarray(vecs, jnp.float32)
    x, y, z = v[..., 0], v[..., 1], v[..., 2]
    vals = _sh_values(max_degree, x, y, z)
    cols = [jnp.full(x.shape, c, jnp.float32) if isinstance(c, float) else c
            for c in vals]
    return jnp.stack(cols, axis=-1)


# -------------------------------------------------------------------- main --

if __name__ == "__main__":
    key = jax.random.PRNGKey(0)
    kv, kr = jax.random.split(key)

    # small shapes: batch=2, seq=8 unit direction vectors (+ unused roughness)
    raw = jax.random.normal(kv, (2, 8, 3), dtype=jnp.float32)
    vecs = raw / jnp.linalg.norm(raw, axis=-1, keepdims=True)
    roughness = jax.random.uniform(kr, (2, 8, 1), dtype=jnp.float32)

    # default module config: max_degree=1 -> dim 4
    out1 = jax.block_until_ready(full_ish(vecs, roughness, max_degree=1))
    ref1 = jax.block_until_ready(full_ish_ref(vecs, max_degree=1))
    assert out1.shape == (2, 8, 4)
    assert jnp.allclose(out1, ref1, rtol=1e-5, atol=1e-6)

    # highest supported config: max_degree=4 -> dim 25
    out4 = jax.block_until_ready(full_ish(vecs, roughness, max_degree=4))
    ref4 = jax.block_until_ready(full_ish_ref(vecs, max_degree=4))
    assert out4.shape == (2, 8, 25)
    assert jnp.allclose(out4, ref4, rtol=1e-5, atol=1e-6)

    print("KERNEL_OK")
</pallas_src>

<mosaic_0001>
module attributes {stable_mosaic.version = 11 : i64} {
  func.func @kernel(%arg0: i32, %arg1: memref<3x8x128xf32, #tpu.memory_space<vmem>>, %arg2: memref<4x8x128xf32, #tpu.memory_space<vmem>>) attributes {dimension_semantics = [#tpu.dimension_semantics<parallel>], iteration_bounds = array<i64: 1>, scalar_prefetch = 0 : i64, scratch_operands = 0 : i64, tpu.core_type = #tpu.core_type<tc>, window_params = [{transform_indices = @transform_0, window_bounds = array<i64: 3, 8, 128>}, {transform_indices = @transform_1, window_bounds = array<i64: 4, 8, 128>}]} {
    %c0 = arith.constant 0 : index
    %c0_0 = arith.constant 0 : index
    %c0_1 = arith.constant 0 : index
    %0 = vector.load %arg1[%c0, %c0_0, %c0_1] : memref<3x8x128xf32, #tpu.memory_space<vmem>>, vector<1x8x128xf32>
    %1 = vector.shape_cast %0 : vector<1x8x128xf32> to vector<8x128xf32>
    %c1 = arith.constant 1 : index
    %c0_2 = arith.constant 0 : index
    %c0_3 = arith.constant 0 : index
    %2 = vector.load %arg1[%c1, %c0_2, %c0_3] : memref<3x8x128xf32, #tpu.memory_space<vmem>>, vector<1x8x128xf32>
    %3 = vector.shape_cast %2 : vector<1x8x128xf32> to vector<8x128xf32>
    %c2 = arith.constant 2 : index
    %c0_4 = arith.constant 0 : index
    %c0_5 = arith.constant 0 : index
    %4 = vector.load %arg1[%c2, %c0_4, %c0_5] : memref<3x8x128xf32, #tpu.memory_space<vmem>>, vector<1x8x128xf32>
    %5 = vector.shape_cast %4 : vector<1x8x128xf32> to vector<8x128xf32>
    %cst = arith.constant -0.488602519 : f32
    %6 = vector.broadcast %cst : f32 to vector<8x128xf32>
    %7 = arith.mulf %6, %3 : vector<8x128xf32>
    %cst_6 = arith.constant 0.488602519 : f32
    %8 = vector.broadcast %cst_6 : f32 to vector<8x128xf32>
    %9 = arith.mulf %8, %5 : vector<8x128xf32>
    %cst_7 = arith.constant -0.488602519 : f32
    %10 = vector.broadcast %cst_7 : f32 to vector<8x128xf32>
    %11 = arith.mulf %10, %1 : vector<8x128xf32>
    %cst_8 = arith.constant 0.282094806 : f32
    %12 = vector.broadcast %cst_8 : f32 to vector<8x128xf32>
    %c0_9 = arith.constant 0 : index
    %c0_10 = arith.constant 0 : index
    %c0_11 = arith.constant 0 : index
    %13 = vector.load %arg2[%c0_9, %c0_10, %c0_11] : memref<4x8x128xf32, #tpu.memory_space<vmem>>, vector<1x8x128xf32>
    %14 = vector.shape_cast %13 : vector<1x8x128xf32> to vector<8x128xf32>
    %15 = vector.shape_cast %12 : vector<8x128xf32> to vector<1x8x128xf32>
    tpu.vector_store %arg2[%c0_9, %c0_10, %c0_11], %15 {strides = array<i32>} : memref<4x8x128xf32, #tpu.memory_space<vmem>>, vector<1x8x128xf32>,
    %c1_12 = arith.constant 1 : index
    %c0_13 = arith.constant 0 : index
    %c0_14 = arith.constant 0 : index
    %16 = vector.load %arg2[%c1_12, %c0_13, %c0_14] : memref<4x8x128xf32, #tpu.memory_space<vmem>>, vector<1x8x128xf32>
    %17 = vector.shape_cast %16 : vector<1x8x128xf32> to vector<8x128xf32>
    %18 = vector.shape_cast %7 : vector<8x128xf32> to vector<1x8x128xf32>
    tpu.vector_store %arg2[%c1_12, %c0_13, %c0_14], %18 {strides = array<i32>} : memref<4x8x128xf32, #tpu.memory_space<vmem>>, vector<1x8x128xf32>,
    %c2_15 = arith.constant 2 : index
    %c0_16 = arith.constant 0 : index
    %c0_17 = arith.constant 0 : index
    %19 = vector.load %arg2[%c2_15, %c0_16, %c0_17] : memref<4x8x128xf32, #tpu.memory_space<vmem>>, vector<1x8x128xf32>
    %20 = vector.shape_cast %19 : vector<1x8x128xf32> to vector<8x128xf32>
    %21 = vector.shape_cast %9 : vector<8x128xf32> to vector<1x8x128xf32>
    tpu.vector_store %arg2[%c2_15, %c0_16, %c0_17], %21 {strides = array<i32>} : memref<4x8x128xf32, #tpu.memory_space<vmem>>, vector<1x8x128xf32>,
    %c3 = arith.constant 3 : index
    %c0_18 = arith.constant 0 : index
    %c0_19 = arith.constant 0 : index
    %22 = vector.load %arg2[%c3, %c0_18, %c0_19] : memref<4x8x128xf32, #tpu.memory_space<vmem>>, vector<1x8x128xf32>
    %23 = vector.shape_cast %22 : vector<1x8x128xf32> to vector<8x128xf32>
    %24 = vector.shape_cast %11 : vector<8x128xf32> to vector<1x8x128xf32>
    tpu.vector_store %arg2[%c3, %c0_18, %c0_19], %24 {strides = array<i32>} : memref<4x8x128xf32, #tpu.memory_space<vmem>>, vector<1x8x128xf32>,
    return
  }
  func.func @transform_0(%arg0: i32) -> (i32, i32, i32) {
    %c0_i32 = arith.constant 0 : i32
    %c0_i32_0 = arith.constant 0 : i32
    %c0_i32_1 = arith.constant 0 : i32
    return %c0_i32, %arg0, %c0_i32_0 : i32, i32, i32
  }
  func.func @transform_1(%arg0: i32) -> (i32, i32, i32) {
    %c0_i32 = arith.constant 0 : i32
    %c0_i32_0 = arith.constant 0 : i32
    %c0_i32_1 = arith.constant 0 : i32
    return %c0_i32, %arg0, %c0_i32_0 : i32, i32, i32
  }
}

</mosaic_0001>

<llo_original>
// kernel: tpu_custom_call.1
$region0: #{tpu_custom_call.1}
  #allocation0 [shape = 'u32[]', space=smem, size = 0x4, offset = 0x4, fixed_abs, tag = 'smem constant byte address 0x4 - core index']
  #allocation1 [shape = 'u32[144,128]{1,0:T(1,128)}', space=vmem, size = 0x12000, scoped, tag = 'internal scratch']
  %s0 = inlined_call_operand.hbm [shape: f32[3,8,128], index: 0, kind: input, shape index: {}]
  %s1 = inlined_call_operand.hbm [shape: f32[4,8,128], index: 1, kind: output, shape index: {}]
  %s2 = sld [smem:[#allocation0]]
  $region18: #{tpu_custom_call.1} parent=0
    _
  %s4 = ssub.s32 1, %s2
  %s5 = scalar_select 0, %s4, %s2
  $region1: #{tpu_custom_call.1} parent=0
    #allocation2 [shape = 'u8[12288]{0}', space=vmem, size = 0x3000, scoped, tag = 'input window, operand 0, single buffered']
    #allocation3 [shape = 's32[1]{0}', space=sflag, size = 0x4, scoped, tag = 'scoped memory for tpu_custom_call.1']
    #allocation4 [shape = 's32[1]{0}', space=sflag, size = 0x4, scoped, tag = 'scoped memory for tpu_custom_call.1']
    #allocation5 [shape = 'u8[16384]{0}', space=vmem, size = 0x4000, scoped, tag = 'output window, operand 0, single buffered']
    %6 = vsyncpa [#allocation3], 0
    %7 = vsyncpa [#allocation4], 0
    // Predicated region
    $region2: #{tpu_custom_call.1} parent=1 // pred_check
      _
    $region3: #{tpu_custom_call.1} parent=1 // pred_check_branch
      %9 = sbr.rel (0) target = $region5
    $region4: #{tpu_custom_call.1} parent=1 // pred_region
      %s11 = ssub.s32 384, 384
      %12 = vsyncadd [#allocation3], %s11
      %s13 = sshll.u32 [#allocation2], 4
      %s14 = int_to_ptr.vmem [resolvable:$true] %s13
      %19 = dma.hbm_to_vmem [thread:$0]  %s0, 384, %s14, [#allocation3], 128, 128, 8
    $region5: #{tpu_custom_call.1} parent=1 // pred_fallthru
      _
    // Predicated region
    $region6: #{tpu_custom_call.1} parent=1 // pred_check
      _
    $region7: #{tpu_custom_call.1} parent=1 // pred_check_branch
      %21 = sbr.rel (0) target = $region9
    $region8: #{tpu_custom_call.1} parent=1 // pred_region
      %22 = dma.done [#allocation3], 384
    $region9: #{tpu_custom_call.1} parent=1 // pred_fallthru
      _
    %v23 = vld [vmem:[#allocation2] sm:$0xff]
    %s24 = scalar_lea.vmem [#allocation2], 8
    %v25 = vld [vmem:[%s24] sm:$0xff]
    %s26 = scalar_lea.vmem [#allocation2], 16
    %v27 = vld [vmem:[%s26] sm:$0xff]
    %v28 = vmul.f32 %v25, -0.48860252
    %v29 = vmul.f32 %v27, 0.48860252
    %v30 = vmul.f32 %v23, -0.48860252
    %31 = vst [vmem:[#allocation5] sm:$0xff] 0.2820948
    %s32 = scalar_lea.vmem [#allocation5], 8
    %33 = vst [vmem:[%s32] sm:$0xff] %v28
    %s34 = scalar_lea.vmem [#allocation5], 16
    %35 = vst [vmem:[%s34] sm:$0xff] %v29
    %s36 = scalar_lea.vmem [#allocation5], 24
    %37 = vst [vmem:[%s36] sm:$0xff] %v30
    // Predicated region
    $region10: #{tpu_custom_call.1} parent=1 // pred_check
      _
    $region11: #{tpu_custom_call.1} parent=1 // pred_check_branch
      %39 = sbr.rel (0) target = $region13
    $region12: #{tpu_custom_call.1} parent=1 // pred_region
      %s41 = ssub.s32 512, 512
      %42 = vsyncadd [#allocation4], %s41
      %s43 = sshll.u32 [#allocation5], 4
      %s44 = int_to_ptr.vmem [resolvable:$true] %s43
      %49 = dma.vmem_to_hbm [thread:$0]  %s44, 512, %s1, [#allocation4], 128, 128, 8
    $region13: #{tpu_custom_call.1} parent=1 // pred_fallthru
      _
    // Predicated region
    $region14: #{tpu_custom_call.1} parent=1 // pred_check
      _
    $region15: #{tpu_custom_call.1} parent=1 // pred_check_branch
      %51 = sbr.rel (0) target = $region17
    $region16: #{tpu_custom_call.1} parent=1 // pred_region
      %52 = dma.done [#allocation4], 512
    $region17: #{tpu_custom_call.1} parent=1 // pred_fallthru
      _
    %53 = vsyncpa [#allocation3], 1
    %54 = vsyncpa [#allocation4], 1

</llo_original>
